<compile_context>
chip_gen: v7x
topology: tpu7x:2x2x1
jax: 0.10.0
libtpu: 0.0.40
codegen_flags: <defaults>
</compile_context>

<pallas_src>
import functools

import jax
import jax.numpy as jnp
from jax.experimental import pallas as pl
from jax.experimental.pallas import tpu as pltpu


# --------------------------------------------------------------------------
# Kernel 1: masked sum over L, streamed.
# --------------------------------------------------------------------------
def graphconv_reduce_kernel(a_ref, x_ref, s_ref, *, dilation, true_l, l_tile):
    lk = pl.program_id(1)

    @pl.when(lk == 0)
    def _init():
        s_ref[...] = jnp.zeros_like(s_ref)

    a = a_ref[...]                                           # (rows, l_tile), native dtype
    keep = jnp.logical_or(a == dilation, a == -1)
    # Tail-lane mask replaces wrapper-side padding: global lane index < L.
    lane = jax.lax.broadcasted_iota(jnp.int32, a.shape, dimension=1)
    keep = jnp.logical_and(keep, (lane + lk * l_tile) < true_l)

    x = x_ref[...].astype(jnp.float32)                       # bf16/f32 -> f32 in-vreg
    xm = jnp.where(keep, x, jnp.float32(0.0))
    s_ref[...] += jnp.sum(xm, axis=-1, keepdims=True)        # (rows, 1) f32 accumulator


# --------------------------------------------------------------------------
# Kernel 2: (B, C) @ (C, nout) + bias, BatchNorm1d(train) folded to affine, ReLU.
# --------------------------------------------------------------------------
def graphconv_epilogue_kernel(s_ref, wt_ref, b_ref, g_ref, beta_ref, o_ref, *, eps):
    y = jnp.dot(s_ref[...], wt_ref[...], preferred_element_type=jnp.float32)
    y = y + b_ref[...]
    mean = jnp.mean(y, axis=0, keepdims=True)                # (1, nout)
    var = jnp.mean((y - mean) ** 2, axis=0, keepdims=True)   # biased var (BN train)
    scale = g_ref[...] * jax.lax.rsqrt(var + jnp.float32(eps))
    shift = beta_ref[...] - mean * scale
    o_ref[...] = jnp.maximum(y * scale + shift, jnp.float32(0.0))


# --------------------------------------------------------------------------
# Wrapper.
# --------------------------------------------------------------------------
def graph_conv(A, x, weight, bias, gamma, beta, *, dilation=1, eps=1e-5,
               max_l_tile=8192, max_rows_block=None,
               stream_vmem_budget_bytes=32 * 1024 * 1024):
    """A, x: (B, C, L); weight: (nout, C); bias/gamma/beta: (nout,)."""
    B, C, L = x.shape
    nout = weight.shape[0]
    R = B * C

    # Free reshapes of contiguous row-major arrays: no extra HBM pass.
    a2 = A.reshape(R, L)
    x2 = x.reshape(R, L)
    bytes_a = a2.dtype.itemsize
    bytes_x = x2.dtype.itemsize
    per_lane = 2 * (bytes_a + bytes_x)        # double-buffered, both streams, per row*lane

    # Row tiling: multiple of 8 (or full R) sized so even a 128-lane slab fits budget.
    row_cap = max(8, (stream_vmem_budget_bytes // (per_lane * 128)) // 8 * 8)
    if max_rows_block is not None:
        row_cap = min(row_cap, max(8, (max_rows_block // 8) * 8))
    rows_block = R if R <= row_cap else row_cap

    # Lane tiling: largest multiple of 128 within the budget/cap; full L if it all fits.
    l_tile = (stream_vmem_budget_bytes // (per_lane * rows_block)) // 128 * 128
    l_tile = max(128, min(l_tile, max_l_tile))
    if l_tile >= L:
        l_tile = L                             # full-extent block, single L step

    grid = (pl.cdiv(R, rows_block), pl.cdiv(L, l_tile))

    streamed = per_lane * rows_block * l_tile
    vmem_limit = int(min(48 * 1024 * 1024,                      # stay under v7x 64 MiB
                         max(2 * streamed + 2 * 1024 * 1024, 8 * 1024 * 1024)))

    reduce_fn = functools.partial(graphconv_reduce_kernel,
                                  dilation=int(dilation),
                                  true_l=int(L),
                                  l_tile=int(l_tile))

    s = pl.pallas_call(
        reduce_fn,
        out_shape=jax.ShapeDtypeStruct((R, 1), jnp.float32),
        grid=grid,
        in_specs=[
            pl.BlockSpec((rows_block, l_tile), lambda r, k: (r, k)),   # graph A
            pl.BlockSpec((rows_block, l_tile), lambda r, k: (r, k)),   # features x
        ],
        out_specs=pl.BlockSpec((rows_block, 1), lambda r, k: (r, 0)),  # resident over L
        compiler_params=pltpu.CompilerParams(
            dimension_semantics=("parallel", "arbitrary"),
            vmem_limit_bytes=vmem_limit,
        ),
    )(a2, x2)

    # Tiny epilogue: matmul + bias + BN(train) + ReLU on (B, nout).
    s_bc = s.reshape(B, C)
    wt = weight.T.astype(jnp.float32)                    # (C, nout) for the MXU
    b2 = bias.reshape(1, nout).astype(jnp.float32)
    g2 = gamma.reshape(1, nout).astype(jnp.float32)
    be2 = beta.reshape(1, nout).astype(jnp.float32)

    epi_fn = functools.partial(graphconv_epilogue_kernel, eps=float(eps))
    out = pl.pallas_call(
        epi_fn,
        out_shape=jax.ShapeDtypeStruct((B, nout), jnp.float32),
        grid=(1,),
        in_specs=[
            pl.BlockSpec((B, C), lambda i: (0, 0)),
            pl.BlockSpec((C, nout), lambda i: (0, 0)),
            pl.BlockSpec((1, nout), lambda i: (0, 0)),
            pl.BlockSpec((1, nout), lambda i: (0, 0)),
            pl.BlockSpec((1, nout), lambda i: (0, 0)),
        ],
        out_specs=pl.BlockSpec((B, nout), lambda i: (0, 0)),
    )(s_bc, wt, b2, g2, be2)
    return out


# --------------------------------------------------------------------------
# Plain-JAX reference mirroring the PyTorch forward exactly.
# --------------------------------------------------------------------------
def graph_conv_ref(A, x, weight, bias, gamma, beta, *, dilation=1, eps=1e-5):
    keep = (A == dilation) | (A == -1)
    xm = jnp.where(keep, x, 0.0)
    conv = jnp.einsum("oc,bcl->bol", weight, xm)          # Conv1d kernel=1, no bias
    y = conv.sum(axis=-1) + bias[None, :]
    mean = y.mean(axis=0, keepdims=True)
    var = ((y - mean) ** 2).mean(axis=0, keepdims=True)   # biased (BN train mode)
    yhat = (y - mean) / jnp.sqrt(var + eps)
    return jnp.maximum(yhat * gamma[None, :] + beta[None, :], 0.0)


if __name__ == "__main__":
    key = jax.random.PRNGKey(0)
    k_a, k_x, k_w, k_b, k_g, k_be = jax.random.split(key, 6)

    # Small shapes; L is NOT a multiple of 128 so the tail-lane mask is exercised.
    B, C_IN, C_OUT, L = 4, 8, 16, 1600
    DILATION = 1

    # Graph values in {-1, 0, 1, 2}: positions equal to dilation (1) or -1 pass.
    A = jax.random.randint(k_a, (B, C_IN, L), minval=-1, maxval=3)        # int32
    x = jax.random.normal(k_x, (B, C_IN, L), dtype=jnp.float32)

    weight = (jax.random.normal(k_w, (C_OUT, C_IN), dtype=jnp.float32)
              * (1.0 / jnp.sqrt(C_IN)))                   # Conv1d(nin, nout, 1, bias=False)
    bias = 0.1 * jax.random.normal(k_b, (C_OUT,), dtype=jnp.float32)      # self.bias
    gamma = 1.0 + 0.1 * jax.random.normal(k_g, (C_OUT,), dtype=jnp.float32)  # BN weight
    beta = 0.1 * jax.random.normal(k_be, (C_OUT,), dtype=jnp.float32)        # BN bias

    ref = graph_conv_ref(A, x, weight, bias, gamma, beta, dilation=DILATION)

    # Config 1: default big-block path (single L step, single row block).
    out1 = graph_conv(A, x, weight, bias, gamma, beta, dilation=DILATION)
    out1 = jax.block_until_ready(out1)
    assert out1.shape == (B, C_OUT)
    assert jnp.allclose(out1, ref, atol=1e-3, rtol=1e-3), "mismatch (default tiling)"

    # Config 2: forced multi-step pipeline with a partial tail block and row tiling,
    # exercising the tail mask and the 'parallel' row axis.
    out2 = graph_conv(A, x, weight, bias, gamma, beta, dilation=DILATION,
                      max_l_tile=512, max_rows_block=16)
    out2 = jax.block_until_ready(out2)
    assert jnp.allclose(out2, ref, atol=1e-3, rtol=1e-3), "mismatch (tiled path)"

    print("KERNEL_OK")
</pallas_src>

<mosaic_0001>
module attributes {stable_mosaic.version = 11 : i64} {
  func.func @graphconv_reduce_kernel(%arg0: i32, %arg1: i32, %arg2: memref<32x1600xi32, #tpu.memory_space<vmem>>, %arg3: memref<32x1600xf32, #tpu.memory_space<vmem>>, %arg4: memref<32x1xf32, #tpu.memory_space<vmem>>) attributes {dimension_semantics = [#tpu.dimension_semantics<parallel>, #tpu.dimension_semantics<arbitrary>], iteration_bounds = array<i64: 1, 1>, scalar_prefetch = 0 : i64, scratch_operands = 0 : i64, tpu.core_type = #tpu.core_type<tc>, window_params = [{transform_indices = @transform_0, window_bounds = array<i64: 32, 1600>}, {transform_indices = @transform_1, window_bounds = array<i64: 32, 1600>}, {transform_indices = @transform_2, window_bounds = array<i64: 32, 1>}]} {
    %c0_i32 = arith.constant 0 : i32
    %0 = arith.cmpi eq, %arg1, %c0_i32 : i32
    %1 = arith.extui %0 : i1 to i32
    %c0_i32_0 = arith.constant 0 : i32
    %2 = arith.cmpi ne, %1, %c0_i32_0 : i32
    scf.if %2 {
      %cst_10 = arith.constant 0.000000e+00 : f32
      %24 = vector.broadcast %cst_10 : f32 to vector<32x1xf32>
      %c0_11 = arith.constant 0 : index
      %c0_12 = arith.constant 0 : index
      %25 = vector.load %arg4[%c0_11, %c0_12] : memref<32x1xf32, #tpu.memory_space<vmem>>, vector<32x1xf32>
      tpu.vector_store %arg4[%c0_11, %c0_12], %24 {strides = array<i32>} : memref<32x1xf32, #tpu.memory_space<vmem>>, vector<32x1xf32>,
    } else {
    }
    %c0 = arith.constant 0 : index
    %c0_1 = arith.constant 0 : index
    %3 = vector.load %arg2[%c0, %c0_1] : memref<32x1600xi32, #tpu.memory_space<vmem>>, vector<32x1600xi32>
    %c1_i32 = arith.constant 1 : i32
    %4 = vector.broadcast %c1_i32 : i32 to vector<32x1600xi32>
    %5 = arith.cmpi eq, %3, %4 : vector<32x1600xi32>
    %c-1_i32 = arith.constant -1 : i32
    %6 = vector.broadcast %c-1_i32 : i32 to vector<32x1600xi32>
    %7 = arith.cmpi eq, %3, %6 : vector<32x1600xi32>
    %8 = arith.ori %5, %7 : vector<32x1600xi1>
    %9 = tpu.iota {dimensions = array<i32: 1>} : vector<32x1600xi32>
    %c1600_i32 = arith.constant 1600 : i32
    %10 = arith.muli %arg1, %c1600_i32 : i32
    %11 = vector.broadcast %10 : i32 to vector<32x1600xi32>
    %12 = arith.addi %9, %11 : vector<32x1600xi32>
    %c1600_i32_2 = arith.constant 1600 : i32
    %13 = vector.broadcast %c1600_i32_2 : i32 to vector<32x1600xi32>
    %14 = arith.cmpi slt, %12, %13 : vector<32x1600xi32>
    %15 = arith.andi %8, %14 : vector<32x1600xi1>
    %c0_3 = arith.constant 0 : index
    %c0_4 = arith.constant 0 : index
    %16 = vector.load %arg3[%c0_3, %c0_4] : memref<32x1600xf32, #tpu.memory_space<vmem>>, vector<32x1600xf32>
    %cst = arith.constant 0.000000e+00 : f32
    %17 = vector.broadcast %cst : f32 to vector<32x1600xf32>
    %18 = arith.select %15, %16, %17 : vector<32x1600xi1>, vector<32x1600xf32>
    %c0_5 = arith.constant 0 : index
    %c0_6 = arith.constant 0 : index
    %19 = vector.load %arg4[%c0_5, %c0_6] : memref<32x1xf32, #tpu.memory_space<vmem>>, vector<32x1xf32>
    %cst_7 = arith.constant dense<0.000000e+00> : vector<32xf32>
    %20 = vector.multi_reduction <add>, %18, %cst_7 [1] : vector<32x1600xf32> to vector<32xf32>
    %21 = vector.shape_cast %20 : vector<32xf32> to vector<32x1xf32>
    %22 = arith.addf %19, %21 : vector<32x1xf32>
    %c0_8 = arith.constant 0 : index
    %c0_9 = arith.constant 0 : index
    %23 = vector.load %arg4[%c0_8, %c0_9] : memref<32x1xf32, #tpu.memory_space<vmem>>, vector<32x1xf32>
    tpu.vector_store %arg4[%c0_8, %c0_9], %22 {strides = array<i32>} : memref<32x1xf32, #tpu.memory_space<vmem>>, vector<32x1xf32>,
    return
  }
  func.func @transform_0(%arg0: i32, %arg1: i32) -> (i32, i32) {
    %c0_i32 = arith.constant 0 : i32
    return %arg0, %arg1 : i32, i32
  }
  func.func @transform_1(%arg0: i32, %arg1: i32) -> (i32, i32) {
    %c0_i32 = arith.constant 0 : i32
    return %arg0, %arg1 : i32, i32
  }
  func.func @transform_2(%arg0: i32, %arg1: i32) -> (i32, i32) {
    %c0_i32 = arith.constant 0 : i32
    %c0_i32_0 = arith.constant 0 : i32
    return %arg0, %c0_i32 : i32, i32
  }
}

</mosaic_0001>

<llo_original>
// kernel: tpu_custom_call.1
$region0: #{tpu_custom_call.1}
  #allocation0 [shape = 'u32[]', space=smem, size = 0x4, offset = 0x4, fixed_abs, tag = 'smem constant byte address 0x4 - core index']
  #allocation1 [shape = 'u32[144,128]{1,0:T(1,128)}', space=vmem, size = 0x12000, scoped, tag = 'internal scratch']
  %s0 = inlined_call_operand.hbm [shape: s32[32,1600], index: 0, kind: input, shape index: {}]
  %s1 = inlined_call_operand.hbm [shape: f32[32,1600], index: 1, kind: input, shape index: {}]
  %s2 = inlined_call_operand.vmem [shape: f32[32,1], index: 2, kind: output, shape index: {}]
  %s3 = sld [smem:[#allocation0]]
  $region30: #{tpu_custom_call.1} parent=0
    _
  %s5 = ssub.s32 1, %s3
  %s6 = scalar_select 0, %s5, %s3
  $region1: #{tpu_custom_call.1} parent=0
    #allocation2 [shape = 'u8[212992]{0}', space=vmem, size = 0x34000, scoped, tag = 'input window, operand 0, single buffered']
    #allocation3 [shape = 's32[1]{0}', space=sflag, size = 0x4, scoped, tag = 'scoped memory for tpu_custom_call.1']
    #allocation4 [shape = 'u8[212992]{0}', space=vmem, size = 0x34000, scoped, tag = 'input window, operand 1, single buffered']
    #allocation5 [shape = 's32[1]{0}', space=sflag, size = 0x4, scoped, tag = 'scoped memory for tpu_custom_call.1']
    %7 = vsyncpa [#allocation3], 0
    %8 = vsyncpa [#allocation5], 0
    // Predicated region
    $region2: #{tpu_custom_call.1} parent=1 // pred_check
      _
    $region3: #{tpu_custom_call.1} parent=1 // pred_check_branch
      %10 = sbr.rel (0) target = $region5
    $region4: #{tpu_custom_call.1} parent=1 // pred_region
      %s12 = ssub.s32 6656, 6656
      %13 = vsyncadd [#allocation3], %s12
      %s14 = sshll.u32 [#allocation2], 4
      %s15 = int_to_ptr.vmem [resolvable:$true] %s14
      %20 = dma.hbm_to_vmem [thread:$0]  %s0, 6656, %s15, [#allocation3], 1664, 1664, 104
    $region5: #{tpu_custom_call.1} parent=1 // pred_fallthru
      _
    // Predicated region
    $region6: #{tpu_custom_call.1} parent=1 // pred_check
      _
    $region7: #{tpu_custom_call.1} parent=1 // pred_check_branch
      %22 = sbr.rel (0) target = $region9
    $region8: #{tpu_custom_call.1} parent=1 // pred_region
      %s24 = ssub.s32 6656, 6656
      %25 = vsyncadd [#allocation5], %s24
      %s26 = sshll.u32 [#allocation4], 4
      %s27 = int_to_ptr.vmem [resolvable:$true] %s26
      %32 = dma.hbm_to_vmem [thread:$0]  %s1, 6656, %s27, [#allocation5], 1664, 1664, 104
    $region9: #{tpu_custom_call.1} parent=1 // pred_fallthru
      _
    // Predicated region
    $region10: #{tpu_custom_call.1} parent=1 // pred_check
      _
    $region11: #{tpu_custom_call.1} parent=1 // pred_check_branch
      %34 = sbr.rel (0) target = $region13
    $region12: #{tpu_custom_call.1} parent=1 // pred_region
      %35 = dma.done [#allocation3], 6656
    $region13: #{tpu_custom_call.1} parent=1 // pred_fallthru
      _
    // Predicated region
    $region14: #{tpu_custom_call.1} parent=1 // pred_check
      _
    $region15: #{tpu_custom_call.1} parent=1 // pred_check_branch
      %37 = sbr.rel (0) target = $region17
    $region16: #{tpu_custom_call.1} parent=1 // pred_region
      %38 = dma.done [#allocation5], 6656
    $region17: #{tpu_custom_call.1} parent=1 // pred_fallthru
      _
    %p39 = scmp.eq.s32.totalorder 0, 0
    // Predicated region
    $region18: #{tpu_custom_call.1} parent=1 // pred_check
      %p40 = pneg %p39
    $region19: #{tpu_custom_call.1} parent=1 // pred_check_branch
      %42 = sbr.rel (%p40) target = $region21
    $region20: #{tpu_custom_call.1} parent=1 // pred_region
      %vm43 = vcmask 7168
      %44 = vst.msk [vmem:[%s2] sm:$0xff] %vm43, 0.0
      %45 = vst.msk [vmem:[%s2 + $0x8] sm:$0xff] %vm43, 0.0
      %46 = vst.msk [vmem:[%s2 + $0x10] sm:$0xff] %vm43, 0.0
      %47 = vst.msk [vmem:[%s2 + $0x18] sm:$0xff] %vm43, 0.0
    $region21: #{tpu_custom_call.1} parent=1 // pred_fallthru
      _
    %v48 = vld [vmem:[#allocation2] sm:$0xff]
    %v49 = vld [vmem:[#allocation2 + $0x8] sm:$0xff]
    %v50 = vld [vmem:[#allocation2 + $0x10] sm:$0xff]
    %v51 = vld [vmem:[#allocation2 + $0x18] sm:$0xff]
    %v52 = vld [vmem:[#allocation2 + $0x20] sm:$0xff]
    %v53 = vld [vmem:[#allocation2 + $0x28] sm:$0xff]
    %v54 = vld [vmem:[#allocation2 + $0x30] sm:$0xff]
    %v55 = vld [vmem:[#allocation2 + $0x38] sm:$0xff]
    %v56 = vld [vmem:[#allocation2 + $0x40] sm:$0xff]
    %v57 = vld [vmem:[#allocation2 + $0x48] sm:$0xff]
    %v58 = vld [vmem:[#allocation2 + $0x50] sm:$0xff]
    %v59 = vld [vmem:[#allocation2 + $0x58] sm:$0xff]
    %v60 = vld [vmem:[#allocation2 + $0x60] sm:$0xff]
    %v61 = vld [vmem:[#allocation2 + $0x68] sm:$0xff]
    %v62 = vld [vmem:[#allocation2 + $0x70] sm:$0xff]
    %v63 = vld [vmem:[#allocation2 + $0x78] sm:$0xff]
    %v64 = vld [vmem:[#allocation2 + $0x80] sm:$0xff]
    %v65 = vld [vmem:[#allocation2 + $0x88] sm:$0xff]
    %v66 = vld [vmem:[#allocation2 + $0x90] sm:$0xff]
    %v67 = vld [vmem:[#allocation2 + $0x98] sm:$0xff]
    %v68 = vld [vmem:[#allocation2 + $0xa0] sm:$0xff]
    %v69 = vld [vmem:[#allocation2 + $0xa8] sm:$0xff]
    %v70 = vld [vmem:[#allocation2 + $0xb0] sm:$0xff]
    %v71 = vld [vmem:[#allocation2 + $0xb8] sm:$0xff]
    %v72 = vld [vmem:[#allocation2 + $0xc0] sm:$0xff]
    %v73 = vld [vmem:[#allocation2 + $0xc8] sm:$0xff]
    %v74 = vld [vmem:[#allocation2 + $0xd0] sm:$0xff]
    %v75 = vld [vmem:[#allocation2 + $0xd8] sm:$0xff]
    %v76 = vld [vmem:[#allocation2 + $0xe0] sm:$0xff]
    %v77 = vld [vmem:[#allocation2 + $0xe8] sm:$0xff]
    %v78 = vld [vmem:[#allocation2 + $0xf0] sm:$0xff]
    %v79 = vld [vmem:[#allocation2 + $0xf8] sm:$0xff]
    %v80 = vld [vmem:[#allocation2 + $0x100] sm:$0xff]
    %v81 = vld [vmem:[#allocation2 + $0x108] sm:$0xff]
    %v82 = vld [vmem:[#allocation2 + $0x110] sm:$0xff]
    %v83 = vld [vmem:[#allocation2 + $0x118] sm:$0xff]
    %v84 = vld [vmem:[#allocation2 + $0x120] sm:$0xff]
    %v85 = vld [vmem:[#allocation2 + $0x128] sm:$0xff]
    %v86 = vld [vmem:[#allocation2 + $0x130] sm:$0xff]
    %v87 = vld [vmem:[#allocation2 + $0x138] sm:$0xff]
    %v88 = vld [vmem:[#allocation2 + $0x140] sm:$0xff]
    %v89 = vld [vmem:[#allocation2 + $0x148] sm:$0xff]
    %v90 = vld [vmem:[#allocation2 + $0x150] sm:$0xff]
    %v91 = vld [vmem:[#allocation2 + $0x158] sm:$0xff]
    %v92 = vld [vmem:[#allocation2 + $0x160] sm:$0xff]
    %v93 = vld [vmem:[#allocation2 + $0x168] sm:$0xff]
    %v94 = vld [vmem:[#allocation2 + $0x170] sm:$0xff]
    %v95 = vld [vmem:[#allocation2 + $0x178] sm:$0xff]
    %v96 = vld [vmem:[#allocation2 + $0x180] sm:$0xff]
    %v97 = vld [vmem:[#allocation2 + $0x188] sm:$0xff]
    %v98 = vld [vmem:[#allocation2 + $0x190] sm:$0xff]
    %v99 = vld [vmem:[#allocation2 + $0x198] sm:$0xff]
    %vm100 = vcmp.eq.s32.totalorder %v48, 1
    %vm101 = vcmp.eq.s32.totalorder %v49, 1
    %vm102 = vcmp.eq.s32.totalorder %v50, 1
    %vm103 = vcmp.eq.s32.totalorder %v51, 1
    %vm104 = vcmp.eq.s32.totalorder %v52, 1
    %vm105 = vcmp.eq.s32.totalorder %v53, 1
    %vm106 = vcmp.eq.s32.totalorder %v54, 1
    %vm107 = vcmp.eq.s32.totalorder %v55, 1
    %vm108 = vcmp.eq.s32.totalorder %v56, 1
    %vm109 = vcmp.eq.s32.totalorder %v57, 1
    %vm110 = vcmp.eq.s32.totalorder %v58, 1
    %vm111 = vcmp.eq.s32.totalorder %v59, 1
    %vm112 = vcmp.eq.s32.totalorder %v60, 1
    %vm113 = vcmp.eq.s32.totalorder %v61, 1
    %vm114 = vcmp.eq.s32.totalorder %v62, 1
    %vm115 = vcmp.eq.s32.totalorder %v63, 1
    %vm116 = vcmp.eq.s32.totalorder %v64, 1
    %vm117 = vcmp.eq.s32.totalorder %v65, 1
    %vm118 = vcmp.eq.s32.totalorder %v66, 1
    %vm119 = vcmp.eq.s32.totalorder %v67, 1
    %vm120 = vcmp.eq.s32.totalorder %v68, 1
    %vm121 = vcmp.eq.s32.totalorder %v69, 1
    %vm122 = vcmp.eq.s32.totalorder %v70, 1
    %vm123 = vcmp.eq.s32.totalorder %v71, 1
    %vm124 = vcmp.eq.s32.totalorder %v72, 1
    %vm125 = vcmp.eq.s32.totalorder %v73, 1
    %vm126 = vcmp.eq.s32.totalorder %v74, 1
    %vm127 = vcmp.eq.s32.totalorder %v75, 1
    %vm128 = vcmp.eq.s32.totalorder %v76, 1
    %vm129 = vcmp.eq.s32.totalorder %v77, 1
    %vm130 = vcmp.eq.s32.totalorder %v78, 1
    %vm131 = vcmp.eq.s32.totalorder %v79, 1
    %vm132 = vcmp.eq.s32.totalorder %v80, 1
    %vm133 = vcmp.eq.s32.totalorder %v81, 1
    %vm134 = vcmp.eq.s32.totalorder %v82, 1
    %vm135 = vcmp.eq.s32.totalorder %v83, 1
    %vm136 = vcmp.eq.s32.totalorder %v84, 1
    %vm137 = vcmp.eq.s32.totalorder %v85, 1
    %vm138 = vcmp.eq.s32.totalorder %v86, 1
    %vm139 = vcmp.eq.s32.totalorder %v87, 1
    %vm140 = vcmp.eq.s32.totalorder %v88, 1
    %vm141 = vcmp.eq.s32.totalorder %v89, 1
    %vm142 = vcmp.eq.s32.totalorder %v90, 1
    %vm143 = vcmp.eq.s32.totalorder %v91, 1
    %vm144 = vcmp.eq.s32.totalorder %v92, 1
    %vm145 = vcmp.eq.s32.totalorder %v93, 1
    %vm146 = vcmp.eq.s32.totalorder %v94, 1
    %vm147 = vcmp.eq.s32.totalorder %v95, 1
    %vm148 = vcmp.eq.s32.totalorder %v96, 1
    %vm149 = vcmp.eq.s32.totalorder %v97, 1
    %vm150 = vcmp.eq.s32.totalorder %v98, 1
    %vm151 = vcmp.eq.s32.totalorder %v99, 1
    %vm152 = vcmp.eq.s32.totalorder %v48, 4294967295
    %vm153 = vcmp.eq.s32.totalorder %v49, 4294967295
    %vm154 = vcmp.eq.s32.totalorder %v50, 4294967295
    %vm155 = vcmp.eq.s32.totalorder %v51, 4294967295
    %vm156 = vcmp.eq.s32.totalorder %v52, 4294967295
    %vm157 = vcmp.eq.s32.totalorder %v53, 4294967295
    %vm158 = vcmp.eq.s32.totalorder %v54, 4294967295
    %vm159 = vcmp.eq.s32.totalorder %v55, 4294967295
    %vm160 = vcmp.eq.s32.totalorder %v56, 4294967295
    %vm161 = vcmp.eq.s32.totalorder %v57, 4294967295
    %vm162 = vcmp.eq.s32.totalorder %v58, 4294967295
    %vm163 = vcmp.eq.s32.totalorder %v59, 4294967295
    %vm164 = vcmp.eq.s32.totalorder %v60, 4294967295
    %vm165 = vcmp.eq.s32.totalorder %v61, 4294967295
    %vm166 = vcmp.eq.s32.totalorder %v62, 4294967295
    %vm167 = vcmp.eq.s32.totalorder %v63, 4294967295
    %vm168 = vcmp.eq.s32.totalorder %v64, 4294967295
    %vm169 = vcmp.eq.s32.totalorder %v65, 4294967295
    %vm170 = vcmp.eq.s32.totalorder %v66, 4294967295
    %vm171 = vcmp.eq.s32.totalorder %v67, 4294967295
    %vm172 = vcmp.eq.s32.totalorder %v68, 4294967295
    %vm173 = vcmp.eq.s32.totalorder %v69, 4294967295
    %vm174 = vcmp.eq.s32.totalorder %v70, 4294967295
    %vm175 = vcmp.eq.s32.totalorder %v71, 4294967295
    %vm176 = vcmp.eq.s32.totalorder %v72, 4294967295
    %vm177 = vcmp.eq.s32.totalorder %v73, 4294967295
    %vm178 = vcmp.eq.s32.totalorder %v74, 4294967295
    %vm179 = vcmp.eq.s32.totalorder %v75, 4294967295
    %vm180 = vcmp.eq.s32.totalorder %v76, 4294967295
    %vm181 = vcmp.eq.s32.totalorder %v77, 4294967295
    %vm182 = vcmp.eq.s32.totalorder %v78, 4294967295
    %vm183 = vcmp.eq.s32.totalorder %v79, 4294967295
    %vm184 = vcmp.eq.s32.totalorder %v80, 4294967295
    %vm185 = vcmp.eq.s32.totalorder %v81, 4294967295
    %vm186 = vcmp.eq.s32.totalorder %v82, 4294967295
    %vm187 = vcmp.eq.s32.totalorder %v83, 4294967295
    %vm188 = vcmp.eq.s32.totalorder %v84, 4294967295
    %vm189 = vcmp.eq.s32.totalorder %v85, 4294967295
    %vm190 = vcmp.eq.s32.totalorder %v86, 4294967295
    %vm191 = vcmp.eq.s32.totalorder %v87, 4294967295
    %vm192 = vcmp.eq.s32.totalorder %v88, 4294967295
    %vm193 = vcmp.eq.s32.totalorder %v89, 4294967295
    %vm194 = vcmp.eq.s32.totalorder %v90, 4294967295
    %vm195 = vcmp.eq.s32.totalorder %v91, 4294967295
    %vm196 = vcmp.eq.s32.totalorder %v92, 4294967295
    %vm197 = vcmp.eq.s32.totalorder %v93, 4294967295
    %vm198 = vcmp.eq.s32.totalorder %v94, 4294967295
    %vm199 = vcmp.eq.s32.totalorder %v95, 4294967295
    %vm200 = vcmp.eq.s32.totalorder %v96, 4294967295
    %vm201 = vcmp.eq.s32.totalorder %v97, 4294967295
    %vm202 = vcmp.eq.s32.totalorder %v98, 4294967295
    %vm203 = vcmp.eq.s32.totalorder %v99, 4294967295
    %vm204 = vmor %vm100, %vm152
    %vm205 = vmor %vm101, %vm153
    %vm206 = vmor %vm102, %vm154
    %vm207 = vmor %vm103, %vm155
    %vm208 = vmor %vm104, %vm156
    %vm209 = vmor %vm105, %vm157
    %vm210 = vmor %vm106, %vm158
    %vm211 = vmor %vm107, %vm159
    %vm212 = vmor %vm108, %vm160
    %vm213 = vmor %vm109, %vm161
    %vm214 = vmor %vm110, %vm162
    %vm215 = vmor %vm111, %vm163
    %vm216 = vmor %vm112, %vm164
    %vm217 = vmor %vm113, %vm165
    %vm218 = vmor %vm114, %vm166
    %vm219 = vmor %vm115, %vm167
    %vm220 = vmor %vm116, %vm168
    %vm221 = vmor %vm117, %vm169
    %vm222 = vmor %vm118, %vm170
    %vm223 = vmor %vm119, %vm171
    %vm224 = vmor %vm120, %vm172
    %vm225 = vmor %vm121, %vm173
    %vm226 = vmor %vm122, %vm174
    %vm227 = vmor %vm123, %vm175
    %vm228 = vmor %vm124, %vm176
    %vm229 = vmor %vm125, %vm177
    %vm230 = vmor %vm126, %vm178
    %vm231 = vmor %vm127, %vm179
    %vm232 = vmor %vm128, %vm180
    %vm233 = vmor %vm129, %vm181
    %vm234 = vmor %vm130, %vm182
    %vm235 = vmor %vm131, %vm183
    %vm236 = vmor %vm132, %vm184
    %vm237 = vmor %vm133, %vm185
    %vm238 = vmor %vm134, %vm186
    %vm239 = vmor %vm135, %vm187
    %vm240 = vmor %vm136, %vm188
    %vm241 = vmor %vm137, %vm189
    %vm242 = vmor %vm138, %vm190
    %vm243 = vmor %vm139, %vm191
    %vm244 = vmor %vm140, %vm192
    %vm245 = vmor %vm141, %vm193
    %vm246 = vmor %vm142, %vm194
    %vm247 = vmor %vm143, %vm195
    %vm248 = vmor %vm144, %vm196
    %vm249 = vmor %vm145, %vm197
    %vm250 = vmor %vm146, %vm198
    %vm251 = vmor %vm147, %vm199
    %vm252 = vmor %vm148, %vm200
    %vm253 = vmor %vm149, %vm201
    %vm254 = vmor %vm150, %vm202
    %vm255 = vmor %vm151, %vm203
    %v256 = vlaneseq
    %v257 = vand.u32 %v256, 127
    %v258 = vadd.s32 %v257, 128
    %v259 = vadd.s32 %v257, 256
    %v260 = vadd.s32 %v257, 384
    %v261 = vadd.s32 %v257, 512
    %v262 = vadd.s32 %v257, 640
    %v263 = vadd.s32 %v257, 768
    %v264 = vadd.s32 %v257, 896
    %v265 = vadd.s32 %v257, 1024
    %v266 = vadd.s32 %v257, 1152
    %v267 = vadd.s32 %v257, 1280
    %v268 = vadd.s32 %v257, 1408
    %v269 = vadd.s32 %v257, 1536
    %s270 = smul.u32 0, 1600
    %v271 = vstv %s270
    %v272 = vadd.s32 %v257, %v271
    %v273 = vadd.s32 %v258, %v271
    %v274 = vadd.s32 %v259, %v271
    %v275 = vadd.s32 %v260, %v271
    %v276 = vadd.s32 %v261, %v271
    %v277 = vadd.s32 %v262, %v271
    %v278 = vadd.s32 %v263, %v271
    %v279 = vadd.s32 %v264, %v271
    %v280 = vadd.s32 %v265, %v271
    %v281 = vadd.s32 %v266, %v271
    %v282 = vadd.s32 %v267, %v271
    %v283 = vadd.s32 %v268, %v271
    %v284 = vadd.s32 %v269, %v271
    %vm285 = vcmp.lt.s32.totalorder %v272, 1600
    %vm286 = vcmp.lt.s32.totalorder %v273, 1600
    %vm287 = vcmp.lt.s32.totalorder %v274, 1600
    %vm288 = vcmp.lt.s32.totalorder %v275, 1600
    %vm289 = vcmp.lt.s32.totalorder %v276, 1600
    %vm290 = vcmp.lt.s32.totalorder %v277, 1600
    %vm291 = vcmp.lt.s32.totalorder %v278, 1600
    %vm292 = vcmp.lt.s32.totalorder %v279, 1600
    %vm293 = vcmp.lt.s32.totalorder %v280, 1600
    %vm294 = vcmp.lt.s32.totalorder %v281, 1600
    %vm295 = vcmp.lt.s32.totalorder %v282, 1600
    %vm296 = vcmp.lt.s32.totalorder %v283, 1600
    %vm297 = vcmp.lt.s32.totalorder %v284, 1600
    %vm298 = vmand %vm204, %vm285
    %vm299 = vmand %vm205, %vm286
    %vm300 = vmand %vm206, %vm287
    %vm301 = vmand %vm207, %vm288
    %vm302 = vmand %vm208, %vm289
    %vm303 = vmand %vm209, %vm290
    %vm304 = vmand %vm210, %vm291
    %vm305 = vmand %vm211, %vm292
    %vm306 = vmand %vm212, %vm293
    %vm307 = vmand %vm213, %vm294
    %vm308 = vmand %vm214, %vm295
    %vm309 = vmand %vm215, %vm296
    %vm310 = vmand %vm216, %vm297
    %vm311 = vmand %vm217, %vm285
    %vm312 = vmand %vm218, %vm286
    %vm313 = vmand %vm219, %vm287
    %vm314 = vmand %vm220, %vm288
    %vm315 = vmand %vm221, %vm289
    %vm316 = vmand %vm222, %vm290
    %vm317 = vmand %vm223, %vm291
    %vm318 = vmand %vm224, %vm292
    %vm319 = vmand %vm225, %vm293
    %vm320 = vmand %vm226, %vm294
    %vm321 = vmand %vm227, %vm295
    %vm322 = vmand %vm228, %vm296
    %vm323 = vmand %vm229, %vm297
    %vm324 = vmand %vm230, %vm285
    %vm325 = vmand %vm231, %vm286
    %vm326 = vmand %vm232, %vm287
    %vm327 = vmand %vm233, %vm288
    %vm328 = vmand %vm234, %vm289
    %vm329 = vmand %vm235, %vm290
    %vm330 = vmand %vm236, %vm291
    %vm331 = vmand %vm237, %vm292
    %vm332 = vmand %vm238, %vm293
    %vm333 = vmand %vm239, %vm294
    %vm334 = vmand %vm240, %vm295
    %vm335 = vmand %vm241, %vm296
    %vm336 = vmand %vm242, %vm297
    %vm337 = vmand %vm243, %vm285
    %vm338 = vmand %vm244, %vm286
    %vm339 = vmand %vm245, %vm287
    %vm340 = vmand %vm246, %vm288
    %vm341 = vmand %vm247, %vm289
    %vm342 = vmand %vm248, %vm290
    %vm343 = vmand %vm249, %vm291
    %vm344 = vmand %vm250, %vm292
    %vm345 = vmand %vm251, %vm293
    %vm346 = vmand %vm252, %vm294
    %vm347 = vmand %vm253, %vm295
    %vm348 = vmand %vm254, %vm296
    %vm349 = vmand %vm255, %vm297
    %v350 = vld [vmem:[#allocation4] sm:$0xff]
    %v351 = vld [vmem:[#allocation4 + $0x8] sm:$0xff]
    %v352 = vld [vmem:[#allocation4 + $0x10] sm:$0xff]
    %v353 = vld [vmem:[#allocation4 + $0x18] sm:$0xff]
    %v354 = vld [vmem:[#allocation4 + $0x20] sm:$0xff]
    %v355 = vld [vmem:[#allocation4 + $0x28] sm:$0xff]
    %v356 = vld [vmem:[#allocation4 + $0x30] sm:$0xff]
    %v357 = vld [vmem:[#allocation4 + $0x38] sm:$0xff]
    %v358 = vld [vmem:[#allocation4 + $0x40] sm:$0xff]
    %v359 = vld [vmem:[#allocation4 + $0x48] sm:$0xff]
    %v360 = vld [vmem:[#allocation4 + $0x50] sm:$0xff]
    %v361 = vld [vmem:[#allocation4 + $0x58] sm:$0xff]
    %v362 = vld [vmem:[#allocation4 + $0x60] sm:$0xff]
    %v363 = vld [vmem:[#allocation4 + $0x68] sm:$0xff]
    %v364 = vld [vmem:[#allocation4 + $0x70] sm:$0xff]
    %v365 = vld [vmem:[#allocation4 + $0x78] sm:$0xff]
    %v366 = vld [vmem:[#allocation4 + $0x80] sm:$0xff]
    %v367 = vld [vmem:[#allocation4 + $0x88] sm:$0xff]
    %v368 = vld [vmem:[#allocation4 + $0x90] sm:$0xff]
    %v369 = vld [vmem:[#allocation4 + $0x98] sm:$0xff]
    %v370 = vld [vmem:[#allocation4 + $0xa0] sm:$0xff]
    %v371 = vld [vmem:[#allocation4 + $0xa8] sm:$0xff]
    %v372 = vld [vmem:[#allocation4 + $0xb0] sm:$0xff]
    %v373 = vld [vmem:[#allocation4 + $0xb8] sm:$0xff]
    %v374 = vld [vmem:[#allocation4 + $0xc0] sm:$0xff]
    %v375 = vld [vmem:[#allocation4 + $0xc8] sm:$0xff]
    %v376 = vld [vmem:[#allocation4 + $0xd0] sm:$0xff]
    %v377 = vld [vmem:[#allocation4 + $0xd8] sm:$0xff]
    %v378 = vld [vmem:[#allocation4 + $0xe0] sm:$0xff]
    %v379 = vld [vmem:[#allocation4 + $0xe8] sm:$0xff]
    %v380 = vld [vmem:[#allocation4 + $0xf0] sm:$0xff]
    %v381 = vld [vmem:[#allocation4 + $0xf8] sm:$0xff]
    %v382 = vld [vmem:[#allocation4 + $0x100] sm:$0xff]
    %v383 = vld [vmem:[#allocation4 + $0x108] sm:$0xff]
    %v384 = vld [vmem:[#allocation4 + $0x110] sm:$0xff]
    %v385 = vld [vmem:[#allocation4 + $0x118] sm:$0xff]
    %v386 = vld [vmem:[#allocation4 + $0x120] sm:$0xff]
    %v387 = vld [vmem:[#allocation4 + $0x128] sm:$0xff]
    %v388 = vld [vmem:[#allocation4 + $0x130] sm:$0xff]
    %v389 = vld [vmem:[#allocation4 + $0x138] sm:$0xff]
    %v390 = vld [vmem:[#allocation4 + $0x140] sm:$0xff]
    %v391 = vld [vmem:[#allocation4 + $0x148] sm:$0xff]
    %v392 = vld [vmem:[#allocation4 + $0x150] sm:$0xff]
    %v393 = vld [vmem:[#allocation4 + $0x158] sm:$0xff]
    %v394 = vld [vmem:[#allocation4 + $0x160] sm:$0xff]
    %v395 = vld [vmem:[#allocation4 + $0x168] sm:$0xff]
    %v396 = vld [vmem:[#allocation4 + $0x170] sm:$0xff]
    %v397 = vld [vmem:[#allocation4 + $0x178] sm:$0xff]
    %v398 = vld [vmem:[#allocation4 + $0x180] sm:$0xff]
    %v399 = vld [vmem:[#allocation4 + $0x188] sm:$0xff]
    %v400 = vld [vmem:[#allocation4 + $0x190] sm:$0xff]
    %v401 = vld [vmem:[#allocation4 + $0x198] sm:$0xff]
    %v402 = vsel %vm298, %v350, 0.0
    %v403 = vsel %vm299, %v351, 0.0
    %v404 = vsel %vm300, %v352, 0.0
    %v405 = vsel %vm301, %v353, 0.0
    %v406 = vsel %vm302, %v354, 0.0
    %v407 = vsel %vm303, %v355, 0.0
    %v408 = vsel %vm304, %v356, 0.0
    %v409 = vsel %vm305, %v357, 0.0
    %v410 = vsel %vm306, %v358, 0.0
    %v411 = vsel %vm307, %v359, 0.0
    %v412 = vsel %vm308, %v360, 0.0
    %v413 = vsel %vm309, %v361, 0.0
    %v414 = vsel %vm310, %v362, 0.0
    %v415 = vsel %vm311, %v363, 0.0
    %v416 = vsel %vm312, %v364, 0.0
    %v417 = vsel %vm313, %v365, 0.0
    %v418 = vsel %vm314, %v366, 0.0
    %v419 = vsel %vm315, %v367, 0.0
    %v420 = vsel %vm316, %v368, 0.0
    %v421 = vsel %vm317, %v369, 0.0
    %v422 = vsel %vm318, %v370, 0.0
    %v423 = vsel %vm319, %v371, 0.0
    %v424 = vsel %vm320, %v372, 0.0
    %v425 = vsel %vm321, %v373, 0.0
    %v426 = vsel %vm322, %v374, 0.0
    %v427 = vsel %vm323, %v375, 0.0
    %v428 = vsel %vm324, %v376, 0.0
    %v429 = vsel %vm325, %v377, 0.0
    %v430 = vsel %vm326, %v378, 0.0
    %v431 = vsel %vm327, %v379, 0.0
    %v432 = vsel %vm328, %v380, 0.0
    %v433 = vsel %vm329, %v381, 0.0
    %v434 = vsel %vm330, %v382, 0.0
    %v435 = vsel %vm331, %v383, 0.0
    %v436 = vsel %vm332, %v384, 0.0
    %v437 = vsel %vm333, %v385, 0.0
    %v438 = vsel %vm334, %v386, 0.0
    %v439 = vsel %vm335, %v387, 0.0
    %v440 = vsel %vm336, %v388, 0.0
    %v441 = vsel %vm337, %v389, 0.0
    %v442 = vsel %vm338, %v390, 0.0
    %v443 = vsel %vm339, %v391, 0.0
    %v444 = vsel %vm340, %v392, 0.0
    %v445 = vsel %vm341, %v393, 0.0
    %v446 = vsel %vm342, %v394, 0.0
    %v447 = vsel %vm343, %v395, 0.0
    %v448 = vsel %vm344, %v396, 0.0
    %v449 = vsel %vm345, %v397, 0.0
    %v450 = vsel %vm346, %v398, 0.0
    %v451 = vsel %vm347, %v399, 0.0
    %v452 = vsel %vm348, %v400, 0.0
    %v453 = vsel %vm349, %v401, 0.0
    %v454 = vld [vmem:[%s2] sm:$0xff]
    %v455 = vld [vmem:[%s2 + $0x8] sm:$0xff]
    %v456 = vld [vmem:[%s2 + $0x10] sm:$0xff]
    %v457 = vld [vmem:[%s2 + $0x18] sm:$0xff]
    %v458 = vadd.f32 %v402, %v403
    %v459 = vadd.f32 %v458, %v404
    %v460 = vadd.f32 %v459, %v405
    %v461 = vadd.f32 %v460, %v406
    %v462 = vadd.f32 %v461, %v407
    %v463 = vadd.f32 %v462, %v408
    %v464 = vadd.f32 %v463, %v409
    %v465 = vadd.f32 %v464, %v410
    %v466 = vadd.f32 %v465, %v411
    %v467 = vadd.f32 %v466, %v412
    %v468 = vadd.f32 %v467, %v413
    %vm469 = vcmask 523264
    %v470 = vsel %vm469, %v414, 0.0
    %v471 = vadd.f32 %v468, %v470
    %472 = vadd.xlane.f32.xlu0 %v471
    %v473 = vpop.xlane.xlu0 %472
    %v474 = vadd.f32 %v415, %v416
    %v475 = vadd.f32 %v474, %v417
    %v476 = vadd.f32 %v475, %v418
    %v477 = vadd.f32 %v476, %v419
    %v478 = vadd.f32 %v477, %v420
    %v479 = vadd.f32 %v478, %v421
    %v480 = vadd.f32 %v479, %v422
    %v481 = vadd.f32 %v480, %v423
    %v482 = vadd.f32 %v481, %v424
    %v483 = vadd.f32 %v482, %v425
    %v484 = vadd.f32 %v483, %v426
    %v485 = vsel %vm469, %v427, 0.0
    %v486 = vadd.f32 %v484, %v485
    %487 = vadd.xlane.f32.xlu0 %v486
    %v488 = vpop.xlane.xlu0 %487
    %v489 = vadd.f32 %v428, %v429
    %v490 = vadd.f32 %v489, %v430
    %v491 = vadd.f32 %v490, %v431
    %v492 = vadd.f32 %v491, %v432
    %v493 = vadd.f32 %v492, %v433
    %v494 = vadd.f32 %v493, %v434
    %v495 = vadd.f32 %v494, %v435
    %v496 = vadd.f32 %v495, %v436
    %v497 = vadd.f32 %v496, %v437
    %v498 = vadd.f32 %v497, %v438
    %v499 = vadd.f32 %v498, %v439
    %v500 = vsel %vm469, %v440, 0.0
    %v501 = vadd.f32 %v499, %v500
    %502 = vadd.xlane.f32.xlu0 %v501
    %v503 = vpop.xlane.xlu0 %502
    %v504 = vadd.f32 %v441, %v442
    %v505 = vadd.f32 %v504, %v443
    %v506 = vadd.f32 %v505, %v444
    %v507 = vadd.f32 %v506, %v445
    %v508 = vadd.f32 %v507, %v446
    %v509 = vadd.f32 %v508, %v447
    %v510 = vadd.f32 %v509, %v448
    %v511 = vadd.f32 %v510, %v449
    %v512 = vadd.f32 %v511, %v450
    %v513 = vadd.f32 %v512, %v451
    %v514 = vadd.f32 %v513, %v452
    %v515 = vsel %vm469, %v453, 0.0
    %v516 = vadd.f32 %v514, %v515
    %517 = vadd.xlane.f32.xlu0 %v516
    %v518 = vpop.xlane.xlu0 %517
    %v519 = vadd.f32 %v454, %v473
    %v520 = vadd.f32 %v455, %v488
    %v521 = vadd.f32 %v456, %v503
    %v522 = vadd.f32 %v457, %v518
    %vm523 = vcmask 7168
    %524 = vst.msk [vmem:[%s2] sm:$0xff] %vm523, %v519
    %525 = vst.msk [vmem:[%s2 + $0x8] sm:$0xff] %vm523, %v520
    %526 = vst.msk [vmem:[%s2 + $0x10] sm:$0xff] %vm523, %v521
    %527 = vst.msk [vmem:[%s2 + $0x18] sm:$0xff] %vm523, %v522
    // Predicated region
    $region22: #{tpu_custom_call.1} parent=1 // pred_check
      _
    $region23: #{tpu_custom_call.1} parent=1 // pred_check_branch
      %529 = sbr.rel (0) target = $region25
    $region24: #{tpu_custom_call.1} parent=1 // pred_region
      _
    $region25: #{tpu_custom_call.1} parent=1 // pred_fallthru
      _
    // Predicated region
    $region26: #{tpu_custom_call.1} parent=1 // pred_check
      _
    $region27: #{tpu_custom_call.1} parent=1 // pred_check_branch
      %531 = sbr.rel (0) target = $region29
    $region28: #{tpu_custom_call.1} parent=1 // pred_region
      _
    $region29: #{tpu_custom_call.1} parent=1 // pred_fallthru
      _
    %532 = vsyncpa [#allocation3], 1
    %533 = vsyncpa [#allocation5], 1

</llo_original>
